<compile_context>
chip_gen: v7x
topology: tpu7x:2x2x1
jax: 0.10.0
libtpu: 0.0.40
codegen_flags: <defaults>
</compile_context>

<pallas_src>
import functools

import jax
import jax.numpy as jnp
from jax import lax
from jax.experimental import pallas as pl
from jax.experimental.pallas import tpu as pltpu

_LANES = 128
_SUBLANES = 8
_ROW_ALIGN = 32  # multiple of sublane packing for f32(8)/bf16(16)/int8(32)


def _round_up(n, m):
    return ((n + m - 1) // m) * m


def _pow_abs(d, p):
    """|d| ** p with fast paths.  d is f32; p is a static Python number > 0."""
    p_f = float(p)
    if p_f == float(int(p_f)) and int(p_f) >= 1:
        ip = int(p_f)
        if ip % 2 == 0:
            return lax.integer_pow(d, ip)               # even power: no abs needed
        return lax.integer_pow(jnp.abs(d), ip)
    if 2.0 * p_f == float(int(2.0 * p_f)):
        # half-integer exponent: |d|^(k+0.5) = |d|^k * sqrt(|d|)  (1 EUP op/elem)
        a = jnp.abs(d)
        k = int(2.0 * p_f) // 2
        return lax.integer_pow(a, k) * jnp.sqrt(a)
    # generic fractional p via exp(p * log(|d|)), guarding d == 0
    a = jnp.abs(d)
    safe = jnp.maximum(a, jnp.float32(1e-30))
    return jnp.where(a > 0.0,
                     jnp.exp(jnp.float32(p_f) * jnp.log(safe)),
                     jnp.float32(0.0))


def _minkowski_kernel(x_ref, y_ref, out_ref, *, p, rows, block_rows,
                      blocks_per_split, need_mask):
    i = pl.program_id(1)

    # Init the resident per-core accumulator (the output block itself).
    @pl.when(i == 0)
    def _():
        out_ref[...] = jnp.zeros_like(out_ref)

    # Blocks are DMA'd in their native dtype; upcast to f32 in-register.
    d = x_ref[...].astype(jnp.float32) - y_ref[...].astype(jnp.float32)

    if need_mask:
        c = pl.program_id(0)
        blk = c * blocks_per_split + i          # un-clamped logical block id
        row_ids = blk * block_rows + lax.broadcasted_iota(
            jnp.int32, (block_rows, _LANES), 0)
        d = jnp.where(row_ids < rows, d, jnp.float32(0.0))

    powed = _pow_abs(d, p)

    # Full-vreg accumulation: (block_rows, 128) -> (block_rows//8, 8, 128),
    # summed over the leading dim (pure elementwise vreg adds).  Cross-sublane
    # / cross-lane reduction and the p-th root are deferred to the wrapper.
    partial = powed.reshape(-1, _SUBLANES, _LANES).sum(axis=0)
    out_ref[...] += partial[None, :, :]


@functools.partial(jax.jit, static_argnames=("p", "block_rows", "num_splits"))
def minkowski_distance(x, y, *, p, block_rows=None, num_splits=2):
    """Pallas TPU implementation of (sum(|x - y| ** p)) ** (1/p)."""
    assert x.shape == y.shape, "x and y must have the same shape"
    p_f = float(p)
    assert p_f > 0.0, "MinkowskiDistance requires p > 0"

    dt = jnp.result_type(x.dtype, y.dtype)
    if not jnp.issubdtype(dt, jnp.floating):
        dt = jnp.float32
    out_dtype = dt

    # Flatten (free, no copy) and keep the native dtype -- no eager f32 cast,
    # no jnp.pad of the full stream.
    xf = x.reshape(-1)
    yf = y.reshape(-1)
    if xf.dtype != dt:
        xf = xf.astype(dt)
    if yf.dtype != dt:
        yf = yf.astype(dt)

    total = xf.size
    rows = total // _LANES
    main = rows * _LANES
    rem = total - main

    def _root(s):
        if p_f == 1.0:
            return s
        if p_f == 2.0:
            return jnp.sqrt(s)
        return jnp.power(s, 1.0 / p_f)

    # <=127-element reshape remainder handled with plain jnp in the wrapper.
    rem_sum = None
    if rem:
        dr = xf[main:].astype(jnp.float32) - yf[main:].astype(jnp.float32)
        rem_sum = jnp.sum(jnp.abs(dr) ** jnp.float32(p_f))

    if rows == 0:
        # Fewer than 128 elements: pure wrapper path.
        s = rem_sum if rem_sum is not None else jnp.float32(0.0)
        return _root(s).astype(out_dtype)

    if rem:
        # Only for non-128-aligned element counts; the slice materializes a
        # copy of the main part (required for the lane-dense reshape).
        xf = xf[:main]
        yf = yf[:main]
    x2 = xf.reshape(rows, _LANES)
    y2 = yf.reshape(rows, _LANES)

    # ---- tiling --------------------------------------------------------
    if block_rows is None:
        itemsize = jnp.dtype(dt).itemsize
        try:
            kind = jax.devices()[0].device_kind.lower()
        except Exception:
            kind = ""
        # ~2 MiB/block on v5 (16 MiB default scoped VMEM), ~4 MiB/block on
        # v6e/v7x (32 MiB default); 2 inputs x 2 pipeline buffers stay in budget.
        blk_bytes = (2 << 20) if "v5" in kind else (4 << 20)
        block_rows = blk_bytes // (_LANES * itemsize)
    block_rows = max(_ROW_ALIGN, (int(block_rows) // _ROW_ALIGN) * _ROW_ALIGN)
    block_rows = min(block_rows, _round_up(rows, _ROW_ALIGN))

    grid_n = pl.cdiv(rows, block_rows)
    n_splits = max(1, min(int(num_splits), grid_n))   # 2 -> both TCs on v7x
    blocks_per_split = pl.cdiv(grid_n, n_splits)
    need_mask = (grid_n * block_rows != rows) or (blocks_per_split * n_splits != grid_n)

    def in_map(c, i):
        blk = c * blocks_per_split + i
        # Clamp phantom blocks (grid_n not divisible by n_splits); they are
        # fully masked to zero inside the kernel.
        return (jnp.minimum(blk, grid_n - 1), 0)

    kernel = functools.partial(
        _minkowski_kernel, p=p, rows=rows, block_rows=block_rows,
        blocks_per_split=blocks_per_split, need_mask=need_mask)

    partials = pl.pallas_call(
        kernel,
        out_shape=jax.ShapeDtypeStruct((n_splits, _SUBLANES, _LANES), jnp.float32),
        grid_spec=pltpu.PrefetchScalarGridSpec(
            num_scalar_prefetch=0,
            grid=(n_splits, blocks_per_split),
            in_specs=[
                pl.BlockSpec((block_rows, _LANES), in_map),
                pl.BlockSpec((block_rows, _LANES), in_map),
            ],
            out_specs=pl.BlockSpec((1, _SUBLANES, _LANES), lambda c, i: (c, 0, 0)),
        ),
        compiler_params=pltpu.CompilerParams(
            # Leading axis shards rows across TensorCores (v7x megacore);
            # inner axis carries the resident accumulator -> arbitrary.
            dimension_semantics=("parallel", "arbitrary")),
    )(x2, y2)

    total_sum = jnp.sum(partials, dtype=jnp.float32)
    if rem_sum is not None:
        total_sum = total_sum + rem_sum
    return _root(total_sum).astype(out_dtype)


def _reference(x, y, p):
    xf = x.astype(jnp.float32)
    yf = y.astype(jnp.float32)
    return jnp.sum(jnp.abs(xf - yf) ** p) ** (1.0 / p)


if __name__ == "__main__":
    key = jax.random.PRNGKey(0)

    shapes = [
        (2, 4, 16, 16),   # 2048 elems: 128-aligned, partial sublane block (mask path)
        (7, 300),         # 2100 elems: exercises the <128-element remainder path
        (3, 5, 7),        # 105 elems: below one lane row (pure wrapper path)
    ]
    ps = (1, 1.5, 2, 3)

    for shape in shapes:
        key, kx, ky = jax.random.split(key, 3)
        x = jax.random.normal(kx, shape, jnp.float32)
        y = jax.random.normal(ky, shape, jnp.float32)
        for p in ps:
            out = jax.block_until_ready(minkowski_distance(x, y, p=p))
            ref = _reference(x, y, p)
            rel = jnp.abs(out - ref) / jnp.maximum(jnp.abs(ref), 1e-12)
            assert rel < 1e-4, f"shape={shape} p={p}: kernel {out} vs ref {ref}"

    print("KERNEL_OK")
</pallas_src>

<mosaic_0001>
module attributes {stable_mosaic.version = 11 : i64} {
  func.func @_minkowski_kernel(%arg0: i32, %arg1: i32, %arg2: memref<32x128xf32, #tpu.memory_space<vmem>>, %arg3: memref<32x128xf32, #tpu.memory_space<vmem>>, %arg4: memref<1x8x128xf32, #tpu.memory_space<vmem>>) attributes {dimension_semantics = [#tpu.dimension_semantics<parallel>, #tpu.dimension_semantics<arbitrary>], iteration_bounds = array<i64: 1, 1>, scalar_prefetch = 0 : i64, scratch_operands = 0 : i64, tpu.core_type = #tpu.core_type<tc>, window_params = [{transform_indices = @transform_0, window_bounds = array<i64: 32, 128>}, {transform_indices = @transform_1, window_bounds = array<i64: 32, 128>}, {transform_indices = @transform_2, window_bounds = array<i64: 1, 8, 128>}]} {
    %c0_i32 = arith.constant 0 : i32
    %0 = arith.cmpi eq, %arg1, %c0_i32 : i32
    %1 = arith.extui %0 : i1 to i32
    %c0_i32_0 = arith.constant 0 : i32
    %2 = arith.cmpi ne, %1, %c0_i32_0 : i32
    scf.if %2 {
      %cst_11 = arith.constant 0.000000e+00 : f32
      %23 = vector.broadcast %cst_11 : f32 to vector<1x8x128xf32>
      %c0_12 = arith.constant 0 : index
      %c0_13 = arith.constant 0 : index
      %c0_14 = arith.constant 0 : index
      %24 = vector.load %arg4[%c0_12, %c0_13, %c0_14] : memref<1x8x128xf32, #tpu.memory_space<vmem>>, vector<1x8x128xf32>
      tpu.vector_store %arg4[%c0_12, %c0_13, %c0_14], %23 {strides = array<i32>} : memref<1x8x128xf32, #tpu.memory_space<vmem>>, vector<1x8x128xf32>,
    } else {
    }
    %c0 = arith.constant 0 : index
    %c0_1 = arith.constant 0 : index
    %3 = vector.load %arg2[%c0, %c0_1] : memref<32x128xf32, #tpu.memory_space<vmem>>, vector<32x128xf32>
    %c0_2 = arith.constant 0 : index
    %c0_3 = arith.constant 0 : index
    %4 = vector.load %arg3[%c0_2, %c0_3] : memref<32x128xf32, #tpu.memory_space<vmem>>, vector<32x128xf32>
    %5 = arith.subf %3, %4 : vector<32x128xf32>
    %c1_i32 = arith.constant 1 : i32
    %6 = arith.muli %arg0, %c1_i32 : i32
    %7 = arith.addi %6, %arg1 : i32
    %c32_i32 = arith.constant 32 : i32
    %8 = arith.muli %7, %c32_i32 : i32
    %9 = tpu.iota {dimensions = array<i32: 0>} : vector<32x128xi32>
    %10 = vector.broadcast %8 : i32 to vector<32x128xi32>
    %11 = arith.addi %10, %9 : vector<32x128xi32>
    %c16_i32 = arith.constant 16 : i32
    %12 = vector.broadcast %c16_i32 : i32 to vector<32x128xi32>
    %13 = arith.cmpi slt, %11, %12 : vector<32x128xi32>
    %cst = arith.constant 0.000000e+00 : f32
    %14 = vector.broadcast %cst : f32 to vector<32x128xf32>
    %15 = arith.select %13, %5, %14 : vector<32x128xi1>, vector<32x128xf32>
    %16 = math.absf %15 : vector<32x128xf32>
    %17 = vector.shape_cast %16 : vector<32x128xf32> to vector<4x8x128xf32>
    %cst_4 = arith.constant dense<0.000000e+00> : vector<8x128xf32>
    %18 = vector.multi_reduction <add>, %17, %cst_4 [0] : vector<4x8x128xf32> to vector<8x128xf32>
    %c0_5 = arith.constant 0 : index
    %c0_6 = arith.constant 0 : index
    %c0_7 = arith.constant 0 : index
    %19 = vector.load %arg4[%c0_5, %c0_6, %c0_7] : memref<1x8x128xf32, #tpu.memory_space<vmem>>, vector<1x8x128xf32>
    %20 = vector.shape_cast %18 : vector<8x128xf32> to vector<1x8x128xf32>
    %21 = arith.addf %19, %20 : vector<1x8x128xf32>
    %c0_8 = arith.constant 0 : index
    %c0_9 = arith.constant 0 : index
    %c0_10 = arith.constant 0 : index
    %22 = vector.load %arg4[%c0_8, %c0_9, %c0_10] : memref<1x8x128xf32, #tpu.memory_space<vmem>>, vector<1x8x128xf32>
    tpu.vector_store %arg4[%c0_8, %c0_9, %c0_10], %21 {strides = array<i32>} : memref<1x8x128xf32, #tpu.memory_space<vmem>>, vector<1x8x128xf32>,
    return
  }
  func.func @transform_0(%arg0: i32, %arg1: i32) -> (i32, i32) {
    %c1_i32 = arith.constant 1 : i32
    %0 = arith.muli %arg0, %c1_i32 : i32
    %1 = arith.addi %0, %arg1 : i32
    %c0_i32 = arith.constant 0 : i32
    %2 = arith.minsi %1, %c0_i32 : i32
    %c0_i32_0 = arith.constant 0 : i32
    %c0_i32_1 = arith.constant 0 : i32
    return %2, %c0_i32_0 : i32, i32
  }
  func.func @transform_1(%arg0: i32, %arg1: i32) -> (i32, i32) {
    %c1_i32 = arith.constant 1 : i32
    %0 = arith.muli %arg0, %c1_i32 : i32
    %1 = arith.addi %0, %arg1 : i32
    %c0_i32 = arith.constant 0 : i32
    %2 = arith.minsi %1, %c0_i32 : i32
    %c0_i32_0 = arith.constant 0 : i32
    %c0_i32_1 = arith.constant 0 : i32
    return %2, %c0_i32_0 : i32, i32
  }
  func.func @transform_2(%arg0: i32, %arg1: i32) -> (i32, i32, i32) {
    %c0_i32 = arith.constant 0 : i32
    %c0_i32_0 = arith.constant 0 : i32
    %c0_i32_1 = arith.constant 0 : i32
    return %arg0, %c0_i32, %c0_i32_0 : i32, i32, i32
  }
}

</mosaic_0001>

<llo_original>
// kernel: minkowski_distance.1
$region0: #{minkowski_distance.1}
  #allocation0 [shape = 'u32[]', space=smem, size = 0x4, offset = 0x4, fixed_abs, tag = 'smem constant byte address 0x4 - core index']
  #allocation1 [shape = 'u32[144,128]{1,0:T(1,128)}', space=vmem, size = 0x12000, scoped, tag = 'internal scratch']
  %s0 = inlined_call_operand.vmem [shape: f32[16,128], index: 0, kind: input, shape index: {}]
  %s1 = inlined_call_operand.vmem [shape: f32[16,128], index: 1, kind: input, shape index: {}]
  %s2 = inlined_call_operand.vmem [shape: f32[1,8,128], index: 2, kind: output, shape index: {}]
  %s3 = sld [smem:[#allocation0]]
  $region22: #{minkowski_distance.1} parent=0
    _
  %s5 = ssub.s32 1, %s3
  %s6 = scalar_select 0, %s5, %s3
  // Predicated region
  $region2: #{minkowski_distance.1} parent=0 // pred_check
    _
  $region3: #{minkowski_distance.1} parent=0 // pred_check_branch
    %8 = sbr.rel (0) target = $region5
  $region4: #{minkowski_distance.1} parent=0 // pred_region
    %s9 = sadd.s32 0, 0
    %p10 = scmp.lt.s32.totalorder %s9, 0
    %s11 = scalar_select %p10, %s9, 0
    %s12 = smul.u32 4, %s11
    %s13 = ssub.s32 2, %s12
    %s14 = smul.u32 128, %s13
    %p15 = scmp.lt.s32.totalorder %s12, 1
    %s16 = scalar_select %p15, %s12, 1
    %s17 = smul.addr %s16, 8
    %s18 = scalar_lea.vmem %s0, %s17
    %s19 = sadd.s32 0, 0
    %p20 = scmp.lt.s32.totalorder %s19, 0
    %s21 = scalar_select %p20, %s19, 0
    %s22 = smul.u32 4, %s21
    %s23 = ssub.s32 2, %s22
    %s24 = smul.u32 128, %s23
  $region5: #{minkowski_distance.1} parent=0 // pred_fallthru
    _
  // Predicated region
  $region6: #{minkowski_distance.1} parent=0 // pred_check
    _
  $region7: #{minkowski_distance.1} parent=0 // pred_check_branch
    %26 = sbr.rel (0) target = $region9
  $region8: #{minkowski_distance.1} parent=0 // pred_region
    %s27 = sadd.s32 0, 0
    %p28 = scmp.lt.s32.totalorder %s27, 0
    %s29 = scalar_select %p28, %s27, 0
    %s30 = smul.u32 4, %s29
    %s31 = ssub.s32 2, %s30
    %s32 = smul.u32 128, %s31
    %p33 = scmp.lt.s32.totalorder %s30, 1
    %s34 = scalar_select %p33, %s30, 1
    %s35 = smul.addr %s34, 8
    %s36 = scalar_lea.vmem %s1, %s35
    %s37 = sadd.s32 0, 0
    %p38 = scmp.lt.s32.totalorder %s37, 0
    %s39 = scalar_select %p38, %s37, 0
    %s40 = smul.u32 4, %s39
    %s41 = ssub.s32 2, %s40
    %s42 = smul.u32 128, %s41
  $region9: #{minkowski_distance.1} parent=0 // pred_fallthru
    _
  %s43 = sadd.s32 0, 0
  %p44 = scmp.lt.s32.totalorder %s43, 0
  %s45 = scalar_select %p44, %s43, 0
  %s46 = smul.u32 4, %s45
  %s47 = ssub.s32 2, %s46
  %s48 = smul.u32 128, %s47
  %p49 = scmp.lt.s32.totalorder %s46, 1
  %s50 = scalar_select %p49, %s46, 1
  %s51 = smul.addr %s50, 8
  %s52 = scalar_lea.vmem %s0, %s51
  %s53 = sadd.s32 0, 0
  %p54 = scmp.lt.s32.totalorder %s53, 0
  %s55 = scalar_select %p54, %s53, 0
  %s56 = smul.u32 4, %s55
  %s57 = ssub.s32 2, %s56
  %s58 = smul.u32 128, %s57
  %p59 = scmp.lt.s32.totalorder %s56, 1
  %s60 = scalar_select %p59, %s56, 1
  %s61 = smul.addr %s60, 8
  %s62 = scalar_lea.vmem %s1, %s61
  %s63 = sadd.s32 0, 0
  %p64 = scmp.lt.s32.totalorder %s63, 0
  %s65 = scalar_select %p64, %s63, 0
  %s66 = smul.u32 4, %s65
  %s67 = ssub.s32 2, %s66
  %s68 = smul.u32 128, %s67
  %p69 = scmp.lt.s32.totalorder %s66, 1
  %s70 = scalar_select %p69, %s66, 1
  %s71 = smul.addr %s70, 8
  %s72 = scalar_lea.vmem %s0, %s71
  %s73 = sadd.s32 0, 0
  %p74 = scmp.lt.s32.totalorder %s73, 0
  %s75 = scalar_select %p74, %s73, 0
  %s76 = smul.u32 4, %s75
  %s77 = ssub.s32 2, %s76
  %s78 = smul.u32 128, %s77
  %s79 = sadd.s32 0, 0
  %p80 = scmp.lt.s32.totalorder %s79, 0
  %s81 = scalar_select %p80, %s79, 0
  %s82 = smul.u32 4, %s81
  %s83 = ssub.s32 2, %s82
  %s84 = smul.u32 128, %s83
  %p85 = scmp.lt.s32.totalorder %s82, 1
  %s86 = scalar_select %p85, %s82, 1
  %s87 = smul.addr %s86, 8
  %s88 = scalar_lea.vmem %s1, %s87
  %s89 = sadd.s32 0, 0
  %p90 = scmp.lt.s32.totalorder %s89, 0
  %s91 = scalar_select %p90, %s89, 0
  %s92 = smul.u32 4, %s91
  %s93 = ssub.s32 2, %s92
  %s94 = smul.u32 128, %s93
  %p95 = scmp.eq.s32.totalorder 0, 0
  // Predicated region
  $region10: #{minkowski_distance.1} parent=0 // pred_check
    %p96 = pneg %p95
  $region11: #{minkowski_distance.1} parent=0 // pred_check_branch
    %98 = sbr.rel (%p96) target = $region13
  $region12: #{minkowski_distance.1} parent=0 // pred_region
    %99 = vst [vmem:[%s2] sm:$0xff] 0.0
  $region13: #{minkowski_distance.1} parent=0 // pred_fallthru
    _
  %v100 = vld [vmem:[%s72] sm:$0xff]
  %v101 = vld [vmem:[%s72 + $0x8] sm:$0xff]
  %v102 = vld [vmem:[%s72 + $0x10] sm:$0xff]
  %v103 = vld [vmem:[%s72 + $0x18] sm:$0xff]
  %v104 = vld [vmem:[%s88] sm:$0xff]
  %v105 = vld [vmem:[%s88 + $0x8] sm:$0xff]
  %v106 = vld [vmem:[%s88 + $0x10] sm:$0xff]
  %v107 = vld [vmem:[%s88 + $0x18] sm:$0xff]
  %v108 = vsub.f32 %v100, %v104
  %v109 = vsub.f32 %v101, %v105
  %v110 = vsub.f32 %v102, %v106
  %v111 = vsub.f32 %v103, %v107
  %s112 = sadd.s32 0, 0
  %s113 = smul.u32 %s112, 32
  %v114 = vlaneseq
  %v115 = vshrl.u32 %v114, 7
  %v116 = vadd.s32 %v115, 8
  %v117 = vadd.s32 %v115, 16
  %v118 = vadd.s32 %v115, 24
  %v119 = vstv %s113
  %v120 = vadd.s32 %v119, %v115
  %v121 = vadd.s32 %v119, %v116
  %v122 = vadd.s32 %v119, %v117
  %v123 = vadd.s32 %v119, %v118
  %vm124 = vcmp.lt.s32.totalorder %v120, 16
  %vm125 = vcmp.lt.s32.totalorder %v121, 16
  %vm126 = vcmp.lt.s32.totalorder %v122, 16
  %vm127 = vcmp.lt.s32.totalorder %v123, 16
  %v128 = vsel %vm124, %v108, 0.0
  %v129 = vsel %vm125, %v109, 0.0
  %v130 = vsel %vm126, %v110, 0.0
  %v131 = vsel %vm127, %v111, 0.0
  %v132 = vand.u32 2147483647, %v128
  %v133 = vand.u32 2147483647, %v129
  %v134 = vand.u32 2147483647, %v130
  %v135 = vand.u32 2147483647, %v131
  %v136 = vadd.f32 %v132, %v133
  %v137 = vadd.f32 %v136, %v134
  %v138 = vadd.f32 %v137, %v135
  %v139 = vld [vmem:[%s2] sm:$0xff]
  %v140 = vadd.f32 %v139, %v138
  %141 = vst [vmem:[%s2] sm:$0xff] %v140
  // Predicated region
  $region14: #{minkowski_distance.1} parent=0 // pred_check
    _
  $region15: #{minkowski_distance.1} parent=0 // pred_check_branch
    %143 = sbr.rel (0) target = $region17
  $region16: #{minkowski_distance.1} parent=0 // pred_region
    _
  $region17: #{minkowski_distance.1} parent=0 // pred_fallthru
    _
  // Predicated region
  $region18: #{minkowski_distance.1} parent=0 // pred_check
    _
  $region19: #{minkowski_distance.1} parent=0 // pred_check_branch
    %145 = sbr.rel (0) target = $region21
  $region20: #{minkowski_distance.1} parent=0 // pred_region
    _
  $region21: #{minkowski_distance.1} parent=0 // pred_fallthru
    _

</llo_original>
